<compile_context>
chip_gen: v7x
topology: tpu7x:2x2x1
jax: 0.10.0
libtpu: 0.0.40
codegen_flags: <defaults>
</compile_context>

<pallas_src>
import jax
import jax.numpy as jnp
from jax.experimental import pallas as pl
from jax.experimental.pallas import tpu as pltpu

# Network dimensions (the PyTorch file uses module-level globals D_in, D_H1, ...).
D_in, D_H1, D_H2, D_H3, D_out = 32, 64, 48, 32, 8
BATCH = 8

PAD = 128                                   # lane width: hidden layers zero-padded to 128
_DIMS = [(D_in, D_H1), (D_H1, D_H2), (D_H2, D_H3), (D_H3, D_out)]
N_LAYERS = len(_DIMS)


def _round_up(n, m):
    return (n + m - 1) // m * m


def _mlp_sigmoid_kernel(x_ref, w_ref, b_ref, o_ref):
    """x_ref: (tm, D_in)     f32 rows of the (row-padded) batch.
       w_ref: (4, 128, 128)  zero-padded weight slab (f32 or bf16); rows >= d_in of a
                             layer are zero, so padded activation lanes (sigmoid(0)=0.5)
                             contribute exactly nothing downstream.
       b_ref: (4, 1, 128)    zero-padded f32 bias slab.
       o_ref: (D_out, tm)    transposed, lane-dense output block."""
    wdt = w_ref.dtype

    # Layer 1: contract K = D_in = 32 directly (no 128-lane input padding needed).
    a = jnp.dot(x_ref[...].astype(wdt), w_ref[0, :D_in, :],
                preferred_element_type=jnp.float32) + b_ref[0]
    h = pl.reciprocal(1.0 + jnp.exp(-a), approx=False)   # exp -> EUP; no VALU divide chain

    # Layers 2..4: full 128x128 padded tiles, fully unrolled.
    for layer in range(1, N_LAYERS):
        a = jnp.dot(h.astype(wdt), w_ref[layer],
                    preferred_element_type=jnp.float32) + b_ref[layer]
        h = pl.reciprocal(1.0 + jnp.exp(-a), approx=False)

    # Transposed store: only the D_out real features are written, as full-128-lane rows
    # (tm is always a multiple of 128).  The (tm,128)->(128,tm) transpose runs on the XLU.
    o_ref[...] = jnp.transpose(h)[:D_out, :].astype(o_ref.dtype)


def pack_params(params, *, weight_dtype=jnp.float32):
    """Pack per-layer weights/biases into two grid-invariant, zero-padded slabs (once).
    weight_dtype=jnp.bfloat16 halves weight DMA/VMEM and hits the bf16 MXU on v6e/v7x."""
    w_slab = jnp.zeros((N_LAYERS, PAD, PAD), weight_dtype)
    b_slab = jnp.zeros((N_LAYERS, 1, PAD), jnp.float32)   # biases stay f32 (elementwise path)
    for i, (din, dout) in enumerate(_DIMS, start=1):
        w_slab = w_slab.at[i - 1, :din, :dout].set(params[f"w{i}"].astype(weight_dtype))
        b_slab = b_slab.at[i - 1, 0, :dout].set(params[f"b{i}"].reshape(-1))
    return w_slab, b_slab


def _choose_tile(B, tm_max):
    """Pick (tm, Bp): tm is a multiple of 128 (keeps the transposed output store lane-dense
    and the in-kernel transpose fully tile-aligned), preferring
      1. >= 2 grid steps when B > 128 (v7x megacore can then split the batch),
      2. minimal row padding at unlucky batch sizes,
      3. the largest tile (fewer grid steps, better HBM streaming)."""
    if B <= 128:
        return 128, 128
    best_key, best = None, None
    for tm in range(128, min(tm_max, _round_up(B, 128)) + 1, 128):
        Bp = _round_up(B, tm)
        key = (Bp // tm < 2, Bp, -tm)
        if best_key is None or key < best_key:
            best_key, best = key, (tm, Bp)
    return best


def net_sigmoid_forward(x, w_slab, b_slab, *, tm_max=2048):
    """x: (B, D_in) float32.  Returns (B, D_out) float32."""
    B = x.shape[0]
    x = x.astype(jnp.float32)
    tm, Bp = _choose_tile(B, tm_max)

    # Row-pad only (feature dim stays at D_in=32).  Padded rows produce junk that lands in
    # the sliced-off columns of the transposed output.
    xp = x if Bp == B else jnp.zeros((Bp, D_in), jnp.float32).at[:B, :].set(x)

    grid = (Bp // tm,)
    flops = 2 * B * sum(di * do for di, do in _DIMS)
    trans = B * sum(do for _, do in _DIMS)                # one exp per sigmoid output
    bytes_accessed = (xp.size * 4 + w_slab.size * w_slab.dtype.itemsize
                      + b_slab.size * 4 + D_out * Bp * 4)

    y_t = pl.pallas_call(
        _mlp_sigmoid_kernel,
        out_shape=jax.ShapeDtypeStruct((D_out, Bp), jnp.float32),
        grid_spec=pltpu.PrefetchScalarGridSpec(
            num_scalar_prefetch=0,
            grid=grid,
            in_specs=[
                # batch-tiled activations (double-buffered by the BlockSpec pipeline)
                pl.BlockSpec((tm, D_in), lambda i: (i, 0)),
                # grid-invariant packed weights/biases: DMA'd once, stay VMEM-resident
                pl.BlockSpec((N_LAYERS, PAD, PAD), lambda i: (0, 0, 0)),
                pl.BlockSpec((N_LAYERS, 1, PAD), lambda i: (0, 0, 0)),
            ],
            out_specs=pl.BlockSpec((D_out, tm), lambda i: (0, i)),
        ),
        compiler_params=pltpu.CompilerParams(
            dimension_semantics=("parallel",),            # shards batch tiles on v7x megacore
        ),
        cost_estimate=pl.CostEstimate(
            flops=flops, transcendentals=trans, bytes_accessed=bytes_accessed),
    )(xp, w_slab, b_slab)

    return y_t[:, :B].T                                   # back to (B, D_out)


def init_params(key):
    """Deterministic init mimicking nn.Linear's uniform(-1/sqrt(fan_in), 1/sqrt(fan_in)).
    Weights stored as (in_features, out_features) so y = x @ W + b."""
    params = {}
    for i, (din, dout) in enumerate(_DIMS, start=1):
        key, kw, kb = jax.random.split(key, 3)
        bound = 1.0 / jnp.sqrt(jnp.float32(din))
        params[f"w{i}"] = jax.random.uniform(
            kw, (din, dout), jnp.float32, minval=-bound, maxval=bound)
        params[f"b{i}"] = jax.random.uniform(
            kb, (1, dout), jnp.float32, minval=-bound, maxval=bound)
    return params


def _reference(x, p):
    h = x
    for i in range(1, N_LAYERS + 1):
        h = jax.nn.sigmoid(h @ p[f"w{i}"] + p[f"b{i}"])
    return h


if __name__ == "__main__":
    key = jax.random.PRNGKey(0)
    key, kx = jax.random.split(key)
    params = init_params(key)

    # --- f32 path at the module's shipped shapes (BATCH=8): tight tolerance ---
    x = jax.random.normal(kx, (BATCH, D_in), jnp.float32)
    w32, b32 = pack_params(params)
    y = net_sigmoid_forward(x, w32, b32)
    jax.block_until_ready(y)
    y_ref = _reference(x, params)
    assert y.shape == (BATCH, D_out)
    assert jnp.allclose(y, y_ref, atol=1e-5, rtol=1e-5)

    # --- larger batch: exercises the multi-tile grid + transposed lane-dense output ---
    key, kx2 = jax.random.split(key)
    xl = jax.random.normal(kx2, (512, D_in), jnp.float32)
    yl = net_sigmoid_forward(xl, w32, b32)
    jax.block_until_ready(yl)
    assert yl.shape == (512, D_out)
    assert jnp.allclose(yl, _reference(xl, params), atol=1e-5, rtol=1e-5)

    # --- bf16-weight path (halves weight DMA/VMEM; native MXU dtype on v6e/v7x) ---
    wbf, bbf = pack_params(params, weight_dtype=jnp.bfloat16)
    ybf = net_sigmoid_forward(xl, wbf, bbf)
    jax.block_until_ready(ybf)
    assert jnp.allclose(ybf, _reference(xl, params), atol=2e-2, rtol=2e-2)

    print("KERNEL_OK")
</pallas_src>

<mosaic_0001>
module attributes {stable_mosaic.version = 11 : i64} {
  func.func @_mlp_sigmoid_kernel(%arg0: i32, %arg1: memref<128x32xf32, #tpu.memory_space<vmem>>, %arg2: memref<4x128x128xf32, #tpu.memory_space<vmem>>, %arg3: memref<4x1x128xf32, #tpu.memory_space<vmem>>, %arg4: memref<8x128xf32, #tpu.memory_space<vmem>>) attributes {dimension_semantics = [#tpu.dimension_semantics<parallel>], iteration_bounds = array<i64: 1>, scalar_prefetch = 0 : i64, scratch_operands = 0 : i64, tpu.core_type = #tpu.core_type<tc>, window_params = [{transform_indices = @transform_0, window_bounds = array<i64: 128, 32>}, {pipeline_mode = #tpu.pipeline_mode<synchronous>, transform_indices = @transform_1, window_bounds = array<i64: 4, 128, 128>}, {pipeline_mode = #tpu.pipeline_mode<synchronous>, transform_indices = @transform_2, window_bounds = array<i64: 4, 1, 128>}, {transform_indices = @transform_3, window_bounds = array<i64: 8, 128>}]} {
    %c0 = arith.constant 0 : index
    %c0_0 = arith.constant 0 : index
    %0 = vector.load %arg1[%c0, %c0_0] : memref<128x32xf32, #tpu.memory_space<vmem>>, vector<128x32xf32>
    %c0_1 = arith.constant 0 : index
    %c0_2 = arith.constant 0 : index
    %c0_3 = arith.constant 0 : index
    %1 = vector.load %arg2[%c0_1, %c0_2, %c0_3] : memref<4x128x128xf32, #tpu.memory_space<vmem>>, vector<1x32x128xf32>
    %2 = vector.shape_cast %1 : vector<1x32x128xf32> to vector<32x128xf32>
    %cst = arith.constant dense<0.000000e+00> : vector<128x128xf32>
    %3 = tpu.matmul %0, %2, %cst {dimension_numbers = #tpu.dot_dimension_numbers<[1], [0], [0], [1], [0, 0, 1, 1], [], []>} : vector<128x32xf32>, vector<32x128xf32>, vector<128x128xf32> -> vector<128x128xf32>
    %c0_4 = arith.constant 0 : index
    %c0_5 = arith.constant 0 : index
    %c0_6 = arith.constant 0 : index
    %4 = vector.load %arg3[%c0_4, %c0_5, %c0_6] : memref<4x1x128xf32, #tpu.memory_space<vmem>>, vector<1x1x128xf32>
    %5 = vector.shape_cast %4 : vector<1x1x128xf32> to vector<1x128xf32>
    %6 = vector.broadcast %5 : vector<1x128xf32> to vector<128x128xf32>
    %7 = arith.addf %3, %6 : vector<128x128xf32>
    %cst_7 = arith.constant 0.000000e+00 : f32
    %8 = vector.broadcast %cst_7 : f32 to vector<128x128xf32>
    %9 = arith.subf %8, %7 : vector<128x128xf32>
    %10 = math.exp %9 : vector<128x128xf32>
    %cst_8 = arith.constant 1.000000e+00 : f32
    %11 = vector.broadcast %cst_8 : f32 to vector<128x128xf32>
    %12 = arith.addf %11, %10 : vector<128x128xf32>
    %13 = tpu.reciprocal %12 : vector<128x128xf32> -> vector<128x128xf32>
    %c1 = arith.constant 1 : index
    %c0_9 = arith.constant 0 : index
    %c0_10 = arith.constant 0 : index
    %14 = vector.load %arg2[%c1, %c0_9, %c0_10] : memref<4x128x128xf32, #tpu.memory_space<vmem>>, vector<1x128x128xf32>
    %15 = vector.shape_cast %14 : vector<1x128x128xf32> to vector<128x128xf32>
    %cst_11 = arith.constant dense<0.000000e+00> : vector<128x128xf32>
    %16 = tpu.matmul %13, %15, %cst_11 {dimension_numbers = #tpu.dot_dimension_numbers<[1], [0], [0], [1], [0, 0, 1, 1], [], []>} : vector<128x128xf32>, vector<128x128xf32>, vector<128x128xf32> -> vector<128x128xf32>
    %c1_12 = arith.constant 1 : index
    %c0_13 = arith.constant 0 : index
    %c0_14 = arith.constant 0 : index
    %17 = vector.load %arg3[%c1_12, %c0_13, %c0_14] : memref<4x1x128xf32, #tpu.memory_space<vmem>>, vector<1x1x128xf32>
    %18 = vector.shape_cast %17 : vector<1x1x128xf32> to vector<1x128xf32>
    %19 = vector.broadcast %18 : vector<1x128xf32> to vector<128x128xf32>
    %20 = arith.addf %16, %19 : vector<128x128xf32>
    %cst_15 = arith.constant 0.000000e+00 : f32
    %21 = vector.broadcast %cst_15 : f32 to vector<128x128xf32>
    %22 = arith.subf %21, %20 : vector<128x128xf32>
    %23 = math.exp %22 : vector<128x128xf32>
    %cst_16 = arith.constant 1.000000e+00 : f32
    %24 = vector.broadcast %cst_16 : f32 to vector<128x128xf32>
    %25 = arith.addf %24, %23 : vector<128x128xf32>
    %26 = tpu.reciprocal %25 : vector<128x128xf32> -> vector<128x128xf32>
    %c2 = arith.constant 2 : index
    %c0_17 = arith.constant 0 : index
    %c0_18 = arith.constant 0 : index
    %27 = vector.load %arg2[%c2, %c0_17, %c0_18] : memref<4x128x128xf32, #tpu.memory_space<vmem>>, vector<1x128x128xf32>
    %28 = vector.shape_cast %27 : vector<1x128x128xf32> to vector<128x128xf32>
    %cst_19 = arith.constant dense<0.000000e+00> : vector<128x128xf32>
    %29 = tpu.matmul %26, %28, %cst_19 {dimension_numbers = #tpu.dot_dimension_numbers<[1], [0], [0], [1], [0, 0, 1, 1], [], []>} : vector<128x128xf32>, vector<128x128xf32>, vector<128x128xf32> -> vector<128x128xf32>
    %c2_20 = arith.constant 2 : index
    %c0_21 = arith.constant 0 : index
    %c0_22 = arith.constant 0 : index
    %30 = vector.load %arg3[%c2_20, %c0_21, %c0_22] : memref<4x1x128xf32, #tpu.memory_space<vmem>>, vector<1x1x128xf32>
    %31 = vector.shape_cast %30 : vector<1x1x128xf32> to vector<1x128xf32>
    %32 = vector.broadcast %31 : vector<1x128xf32> to vector<128x128xf32>
    %33 = arith.addf %29, %32 : vector<128x128xf32>
    %cst_23 = arith.constant 0.000000e+00 : f32
    %34 = vector.broadcast %cst_23 : f32 to vector<128x128xf32>
    %35 = arith.subf %34, %33 : vector<128x128xf32>
    %36 = math.exp %35 : vector<128x128xf32>
    %cst_24 = arith.constant 1.000000e+00 : f32
    %37 = vector.broadcast %cst_24 : f32 to vector<128x128xf32>
    %38 = arith.addf %37, %36 : vector<128x128xf32>
    %39 = tpu.reciprocal %38 : vector<128x128xf32> -> vector<128x128xf32>
    %c3 = arith.constant 3 : index
    %c0_25 = arith.constant 0 : index
    %c0_26 = arith.constant 0 : index
    %40 = vector.load %arg2[%c3, %c0_25, %c0_26] : memref<4x128x128xf32, #tpu.memory_space<vmem>>, vector<1x128x128xf32>
    %41 = vector.shape_cast %40 : vector<1x128x128xf32> to vector<128x128xf32>
    %cst_27 = arith.constant dense<0.000000e+00> : vector<128x128xf32>
    %42 = tpu.matmul %39, %41, %cst_27 {dimension_numbers = #tpu.dot_dimension_numbers<[1], [0], [0], [1], [0, 0, 1, 1], [], []>} : vector<128x128xf32>, vector<128x128xf32>, vector<128x128xf32> -> vector<128x128xf32>
    %c3_28 = arith.constant 3 : index
    %c0_29 = arith.constant 0 : index
    %c0_30 = arith.constant 0 : index
    %43 = vector.load %arg3[%c3_28, %c0_29, %c0_30] : memref<4x1x128xf32, #tpu.memory_space<vmem>>, vector<1x1x128xf32>
    %44 = vector.shape_cast %43 : vector<1x1x128xf32> to vector<1x128xf32>
    %45 = vector.broadcast %44 : vector<1x128xf32> to vector<128x128xf32>
    %46 = arith.addf %42, %45 : vector<128x128xf32>
    %cst_31 = arith.constant 0.000000e+00 : f32
    %47 = vector.broadcast %cst_31 : f32 to vector<128x128xf32>
    %48 = arith.subf %47, %46 : vector<128x128xf32>
    %49 = math.exp %48 : vector<128x128xf32>
    %cst_32 = arith.constant 1.000000e+00 : f32
    %50 = vector.broadcast %cst_32 : f32 to vector<128x128xf32>
    %51 = arith.addf %50, %49 : vector<128x128xf32>
    %52 = tpu.reciprocal %51 : vector<128x128xf32> -> vector<128x128xf32>
    %53 = tpu.transpose %52, [1, 0] : vector<128x128xf32> -> vector<128x128xf32>
    %54 = vector.extract_strided_slice %53 {offsets = [0, 0], sizes = [8, 128], strides = [1, 1]} : vector<128x128xf32> to vector<8x128xf32>
    %c0_33 = arith.constant 0 : index
    %c0_34 = arith.constant 0 : index
    %55 = vector.load %arg4[%c0_33, %c0_34] : memref<8x128xf32, #tpu.memory_space<vmem>>, vector<8x128xf32>
    tpu.vector_store %arg4[%c0_33, %c0_34], %54 {strides = array<i32>} : memref<8x128xf32, #tpu.memory_space<vmem>>, vector<8x128xf32>,
    return
  }
  func.func @transform_0(%arg0: i32) -> (i32, i32) {
    %c0_i32 = arith.constant 0 : i32
    %c0_i32_0 = arith.constant 0 : i32
    return %arg0, %c0_i32 : i32, i32
  }
  func.func @transform_1(%arg0: i32) -> (i32, i32, i32) {
    %c0_i32 = arith.constant 0 : i32
    %c0_i32_0 = arith.constant 0 : i32
    %c0_i32_1 = arith.constant 0 : i32
    %c0_i32_2 = arith.constant 0 : i32
    return %c0_i32, %c0_i32_0, %c0_i32_1 : i32, i32, i32
  }
  func.func @transform_2(%arg0: i32) -> (i32, i32, i32) {
    %c0_i32 = arith.constant 0 : i32
    %c0_i32_0 = arith.constant 0 : i32
    %c0_i32_1 = arith.constant 0 : i32
    %c0_i32_2 = arith.constant 0 : i32
    return %c0_i32, %c0_i32_0, %c0_i32_1 : i32, i32, i32
  }
  func.func @transform_3(%arg0: i32) -> (i32, i32) {
    %c0_i32 = arith.constant 0 : i32
    %c0_i32_0 = arith.constant 0 : i32
    return %c0_i32, %arg0 : i32, i32
  }
}

</mosaic_0001>

<llo_original>
// kernel: tpu_custom_call.1
$region0: #{tpu_custom_call.1}
  #allocation0 [shape = 'u32[]', space=smem, size = 0x4, offset = 0x4, fixed_abs, tag = 'smem constant byte address 0x4 - core index']
  #allocation1 [shape = 'u32[144,128]{1,0:T(1,128)}', space=vmem, size = 0x12000, scoped, tag = 'internal scratch']
  %s0 = inlined_call_operand.vmem [shape: f32[128,32], index: 0, kind: input, shape index: {}]
  %s1 = inlined_call_operand.hbm [shape: f32[4,128,128], index: 1, kind: input, shape index: {}]
  %s2 = inlined_call_operand.vmem [shape: f32[4,1,128], index: 2, kind: input, shape index: {}]
  %s3 = inlined_call_operand.hbm [shape: f32[8,128], index: 3, kind: output, shape index: {}]
  %s4 = sld [smem:[#allocation0]]
  $region26: #{tpu_custom_call.1} parent=0
    _
  %s6 = ssub.s32 1, %s4
  %s7 = scalar_select 0, %s6, %s4
  $region1: #{tpu_custom_call.1} parent=0
    #allocation2 [shape = 'u8[262144]{0}', space=vmem, size = 0x40000, scoped, tag = 'input window, operand 1, single buffered']
    #allocation3 [shape = 's32[1]{0}', space=sflag, size = 0x4, scoped, tag = 'scoped memory for tpu_custom_call.1']
    #allocation4 [shape = 's32[1]{0}', space=sflag, size = 0x4, scoped, tag = 'scoped memory for tpu_custom_call.1']
    #allocation5 [shape = 'u8[4096]{0}', space=vmem, size = 0x1000, scoped, tag = 'output window, operand 0, single buffered']
    %8 = vsyncpa [#allocation3], 0
    %9 = vsyncpa [#allocation4], 0
    // Predicated region
    $region2: #{tpu_custom_call.1} parent=1 // pred_check
      _
    $region3: #{tpu_custom_call.1} parent=1 // pred_check_branch
      %11 = sbr.rel (0) target = $region5
    $region4: #{tpu_custom_call.1} parent=1 // pred_region
      _
    $region5: #{tpu_custom_call.1} parent=1 // pred_fallthru
      _
    // Predicated region
    $region6: #{tpu_custom_call.1} parent=1 // pred_check
      _
    $region7: #{tpu_custom_call.1} parent=1 // pred_check_branch
      %13 = sbr.rel (0) target = $region9
    $region8: #{tpu_custom_call.1} parent=1 // pred_region
      %s15 = ssub.s32 8192, 8192
      %16 = vsyncadd [#allocation3], %s15
      %s17 = sshll.u32 [#allocation2], 4
      %s18 = int_to_ptr.vmem [resolvable:$true] %s17
      %23 = dma.hbm_to_vmem [thread:$0]  %s1, 8192, %s18, [#allocation3], 128, 128, 8
    $region9: #{tpu_custom_call.1} parent=1 // pred_fallthru
      _
    // Predicated region
    $region10: #{tpu_custom_call.1} parent=1 // pred_check
      _
    $region11: #{tpu_custom_call.1} parent=1 // pred_check_branch
      %25 = sbr.rel (0) target = $region13
    $region12: #{tpu_custom_call.1} parent=1 // pred_region
      _
    $region13: #{tpu_custom_call.1} parent=1 // pred_fallthru
      _
    // Predicated region
    $region14: #{tpu_custom_call.1} parent=1 // pred_check
      _
    $region15: #{tpu_custom_call.1} parent=1 // pred_check_branch
      %27 = sbr.rel (0) target = $region17
    $region16: #{tpu_custom_call.1} parent=1 // pred_region
      %28 = dma.done [#allocation3], 8192
    $region17: #{tpu_custom_call.1} parent=1 // pred_fallthru
      _
    %v29 = vld [vmem:[%s0] sm:$0xff]
    %v30 = vld [vmem:[%s0 + $0x8] sm:$0xff]
    %v31 = vld [vmem:[%s0 + $0x10] sm:$0xff]
    %v32 = vld [vmem:[%s0 + $0x18] sm:$0xff]
    %v33 = vld [vmem:[%s0 + $0x20] sm:$0xff]
    %v34 = vld [vmem:[%s0 + $0x28] sm:$0xff]
    %v35 = vld [vmem:[%s0 + $0x30] sm:$0xff]
    %v36 = vld [vmem:[%s0 + $0x38] sm:$0xff]
    %v37 = vld [vmem:[%s0 + $0x40] sm:$0xff]
    %v38 = vld [vmem:[%s0 + $0x48] sm:$0xff]
    %v39 = vld [vmem:[%s0 + $0x50] sm:$0xff]
    %v40 = vld [vmem:[%s0 + $0x58] sm:$0xff]
    %v41 = vld [vmem:[%s0 + $0x60] sm:$0xff]
    %v42 = vld [vmem:[%s0 + $0x68] sm:$0xff]
    %v43 = vld [vmem:[%s0 + $0x70] sm:$0xff]
    %v44 = vld [vmem:[%s0 + $0x78] sm:$0xff]
    %v45 = vld [vmem:[#allocation2] sm:$0xff]
    %v46 = vld [vmem:[#allocation2 + $0x8] sm:$0xff]
    %v47 = vld [vmem:[#allocation2 + $0x10] sm:$0xff]
    %v48 = vld [vmem:[#allocation2 + $0x18] sm:$0xff]
    %v49 = vld [vmem:[%s2] sm:$0x1]
    %v51 = vlaneseq
    %v52 = vshrl.u32 %v51, 7
    %v53 = vsub.s32 0, %v52
    %v54 = vrot.slane %v49, %v53
    %vm56 = vcmask 261120
    %v58 = vsel %vm56, %v29, 0
    %v61 = vsel %vm56, %v30, 0
    %v64 = vsel %vm56, %v31, 0
    %v67 = vsel %vm56, %v32, 0
    %v70 = vsel %vm56, %v33, 0
    %v73 = vsel %vm56, %v34, 0
    %v76 = vsel %vm56, %v35, 0
    %v79 = vsel %vm56, %v36, 0
    %v82 = vsel %vm56, %v37, 0
    %v85 = vsel %vm56, %v38, 0
    %v88 = vsel %vm56, %v39, 0
    %v91 = vsel %vm56, %v40, 0
    %v94 = vsel %vm56, %v41, 0
    %v97 = vsel %vm56, %v42, 0
    %v100 = vsel %vm56, %v43, 0
    %v103 = vsel %vm56, %v44, 0
    %105 = vmatprep.subr.mxu0 0.0
    %106 = vmatpush1.msra.mxu0 %v45
    %107 = vmatprep.subr.mxu0 0.0
    %108 = vmatpush1.msra.mxu0 %v46
    %109 = vmatprep.subr.mxu0 0.0
    %110 = vmatpush1.msra.mxu0 %v47
    %111 = vmatprep.subr.mxu0 0.0
    %112 = vmatpush1.msra.mxu0 %v48
    %113 = vmatprep.subr.mxu0 0.0
    %114 = vmatpush1.msra.mxu0 0.0
    %115 = vmatprep.subr.mxu0 0.0
    %116 = vmatpush1.msra.mxu0 0.0
    %117 = vmatprep.subr.mxu0 0.0
    %118 = vmatpush1.msra.mxu0 0.0
    %119 = vmatprep.subr.mxu0 0.0
    %120 = vmatpush1.msra.mxu0 0.0
    %121 = vmatprep.subr.mxu0 0.0
    %122 = vmatpush1.msra.mxu0 0.0
    %123 = vmatprep.subr.mxu0 0.0
    %124 = vmatpush1.msra.mxu0 0.0
    %125 = vmatprep.subr.mxu0 0.0
    %126 = vmatpush1.msra.mxu0 0.0
    %127 = vmatprep.subr.mxu0 0.0
    %128 = vmatpush1.msra.mxu0 0.0
    %129 = vmatprep.subr.mxu0 0.0
    %130 = vmatpush1.msra.mxu0 0.0
    %131 = vmatprep.subr.mxu0 0.0
    %132 = vmatpush1.msra.mxu0 0.0
    %133 = vmatprep.subr.mxu0 0.0
    %134 = vmatpush1.msra.mxu0 0.0
    %135 = vmatprep.subr.mxu0 0.0
    %136 = vmatpush1.msra.mxu0 0.0
    %137 = vmatprep.subr.mxu0 0.0
    %138 = vmatpush1.msra.mxu0 0.0
    %139 = vmatprep.subr.mxu0 0.0
    %140 = vmatpush1.msra.mxu0 0.0
    %141 = vmatprep.subr.mxu0 0.0
    %142 = vmatpush1.msra.mxu0 0.0
    %143 = vmatprep.subr.mxu0 0.0
    %144 = vmatpush1.msra.mxu0 0.0
    %145 = vmatprep.subr.mxu0 0.0
    %146 = vmatpush1.msra.mxu0 0.0
    %147 = vmatprep.subr.mxu0 0.0
    %148 = vmatpush1.msra.mxu0 0.0
    %149 = vmatprep.subr.mxu0 0.0
    %150 = vmatpush1.msra.mxu0 0.0
    %151 = vmatprep.subr.mxu0 0.0
    %152 = vmatpush1.msra.mxu0 0.0
    %153 = vmatprep.subr.mxu0 0.0
    %154 = vmatpush1.msra.mxu0 0.0
    %155 = vmatprep.subr.mxu0 0.0
    %156 = vmatpush1.msra.mxu0 0.0
    %157 = vmatprep.subr.mxu0 0.0
    %158 = vmatpush1.msra.mxu0 0.0
    %159 = vmatprep.subr.mxu0 0.0
    %160 = vmatpush1.msra.mxu0 0.0
    %161 = vmatprep.subr.mxu0 0.0
    %162 = vmatpush1.msra.mxu0 0.0
    %163 = vmatprep.subr.mxu0 0.0
    %164 = vmatpush1.msra.mxu0 0.0
    %165 = vmatprep.subr.mxu0 0.0
    %166 = vmatpush1.msra.mxu0 0.0
    %167 = vmatprep.subr.mxu0 0.0
    %168 = vmatpush1.msra.mxu0 0.0
    %169 = vmatprep.mubr.f32.mxu0 0.0
    %170 = vmatmul.mubr.f32.gmra.mrb[0].mxu0 %v58
    %v171 = vpop.f32.mrb[0].mxu0
    %v172 = vadd.f32 %v54, %v171
    %v173 = vpop.f32.mrb[0].mxu0
    %174 = vmatprep.mubr.f32.mxu0 0.0
    %175 = vmatmul.mubr.f32.gmra.mrb[0].mxu0 %v61
    %v176 = vpop.f32.mrb[0].mxu0
    %v177 = vadd.f32 %v54, %v176
    %v178 = vpop.f32.mrb[0].mxu0
    %179 = vmatprep.mubr.f32.mxu0 0.0
    %180 = vmatmul.mubr.f32.gmra.mrb[0].mxu0 %v64
    %v181 = vpop.f32.mrb[0].mxu0
    %v182 = vadd.f32 %v54, %v181
    %v183 = vpop.f32.mrb[0].mxu0
    %184 = vmatprep.mubr.f32.mxu0 0.0
    %185 = vmatmul.mubr.f32.gmra.mrb[0].mxu0 %v67
    %v186 = vpop.f32.mrb[0].mxu0
    %v187 = vadd.f32 %v54, %v186
    %v188 = vpop.f32.mrb[0].mxu0
    %189 = vmatprep.mubr.f32.mxu0 0.0
    %190 = vmatmul.mubr.f32.gmra.mrb[0].mxu0 %v70
    %v191 = vpop.f32.mrb[0].mxu0
    %v192 = vadd.f32 %v54, %v191
    %v193 = vpop.f32.mrb[0].mxu0
    %194 = vmatprep.mubr.f32.mxu0 0.0
    %195 = vmatmul.mubr.f32.gmra.mrb[0].mxu0 %v73
    %v196 = vpop.f32.mrb[0].mxu0
    %v197 = vadd.f32 %v54, %v196
    %v198 = vpop.f32.mrb[0].mxu0
    %199 = vmatprep.mubr.f32.mxu0 0.0
    %200 = vmatmul.mubr.f32.gmra.mrb[0].mxu0 %v76
    %v201 = vpop.f32.mrb[0].mxu0
    %v202 = vadd.f32 %v54, %v201
    %v203 = vpop.f32.mrb[0].mxu0
    %204 = vmatprep.mubr.f32.mxu0 0.0
    %205 = vmatmul.mubr.f32.gmra.mrb[0].mxu0 %v79
    %v206 = vpop.f32.mrb[0].mxu0
    %v207 = vadd.f32 %v54, %v206
    %v208 = vpop.f32.mrb[0].mxu0
    %209 = vmatprep.mubr.f32.mxu0 0.0
    %210 = vmatmul.mubr.f32.gmra.mrb[0].mxu0 %v82
    %v211 = vpop.f32.mrb[0].mxu0
    %v212 = vadd.f32 %v54, %v211
    %v213 = vpop.f32.mrb[0].mxu0
    %214 = vmatprep.mubr.f32.mxu0 0.0
    %215 = vmatmul.mubr.f32.gmra.mrb[0].mxu0 %v85
    %v216 = vpop.f32.mrb[0].mxu0
    %v217 = vadd.f32 %v54, %v216
    %v218 = vpop.f32.mrb[0].mxu0
    %219 = vmatprep.mubr.f32.mxu0 0.0
    %220 = vmatmul.mubr.f32.gmra.mrb[0].mxu0 %v88
    %v221 = vpop.f32.mrb[0].mxu0
    %v222 = vadd.f32 %v54, %v221
    %v223 = vpop.f32.mrb[0].mxu0
    %224 = vmatprep.mubr.f32.mxu0 0.0
    %225 = vmatmul.mubr.f32.gmra.mrb[0].mxu0 %v91
    %v226 = vpop.f32.mrb[0].mxu0
    %v227 = vadd.f32 %v54, %v226
    %v228 = vpop.f32.mrb[0].mxu0
    %229 = vmatprep.mubr.f32.mxu0 0.0
    %230 = vmatmul.mubr.f32.gmra.mrb[0].mxu0 %v94
    %v231 = vpop.f32.mrb[0].mxu0
    %v232 = vadd.f32 %v54, %v231
    %v233 = vpop.f32.mrb[0].mxu0
    %234 = vmatprep.mubr.f32.mxu0 0.0
    %235 = vmatmul.mubr.f32.gmra.mrb[0].mxu0 %v97
    %v236 = vpop.f32.mrb[0].mxu0
    %v237 = vadd.f32 %v54, %v236
    %v238 = vpop.f32.mrb[0].mxu0
    %239 = vmatprep.mubr.f32.mxu0 0.0
    %240 = vmatmul.mubr.f32.gmra.mrb[0].mxu0 %v100
    %v241 = vpop.f32.mrb[0].mxu0
    %v242 = vadd.f32 %v54, %v241
    %v243 = vpop.f32.mrb[0].mxu0
    %244 = vmatprep.mubr.f32.mxu0 0.0
    %245 = vmatmul.mubr.f32.gmra.mrb[0].mxu0 %v103
    %v246 = vpop.f32.mrb[0].mxu0
    %v247 = vadd.f32 %v54, %v246
    %v248 = vpop.f32.mrb[0].mxu0
    %249 = vdwg.mxu0
    %v250 = vsub.f32 0.0, %v172
    %v251 = vsub.f32 0.0, %v177
    %v252 = vsub.f32 0.0, %v182
    %v253 = vsub.f32 0.0, %v187
    %v254 = vsub.f32 0.0, %v192
    %v255 = vsub.f32 0.0, %v197
    %v256 = vsub.f32 0.0, %v202
    %v257 = vsub.f32 0.0, %v207
    %v258 = vsub.f32 0.0, %v212
    %v259 = vsub.f32 0.0, %v217
    %v260 = vsub.f32 0.0, %v222
    %v261 = vsub.f32 0.0, %v227
    %v262 = vsub.f32 0.0, %v232
    %v263 = vsub.f32 0.0, %v237
    %v264 = vsub.f32 0.0, %v242
    %v265 = vsub.f32 0.0, %v247
    %v266 = vmul.f32 %v250, 1.442695
    %v267 = vpow.pop %v266
    %v268 = vmul.f32 %v251, 1.442695
    %v269 = vpow.pop %v268
    %v270 = vmul.f32 %v252, 1.442695
    %v271 = vpow.pop %v270
    %v272 = vmul.f32 %v253, 1.442695
    %v273 = vpow.pop %v272
    %v274 = vmul.f32 %v254, 1.442695
    %v275 = vpow.pop %v274
    %v276 = vmul.f32 %v255, 1.442695
    %v277 = vpow.pop %v276
    %v278 = vmul.f32 %v256, 1.442695
    %v279 = vpow.pop %v278
    %v280 = vmul.f32 %v257, 1.442695
    %v281 = vpow.pop %v280
    %v282 = vmul.f32 %v258, 1.442695
    %v283 = vpow.pop %v282
    %v284 = vmul.f32 %v259, 1.442695
    %v285 = vpow.pop %v284
    %v286 = vmul.f32 %v260, 1.442695
    %v287 = vpow.pop %v286
    %v288 = vmul.f32 %v261, 1.442695
    %v289 = vpow.pop %v288
    %v290 = vmul.f32 %v262, 1.442695
    %v291 = vpow.pop %v290
    %v292 = vmul.f32 %v263, 1.442695
    %v293 = vpow.pop %v292
    %v294 = vmul.f32 %v264, 1.442695
    %v295 = vpow.pop %v294
    %v296 = vmul.f32 %v265, 1.442695
    %v297 = vpow.pop %v296
    %v298 = vadd.f32 %v267, 1.0
    %v299 = vadd.f32 %v269, 1.0
    %v300 = vadd.f32 %v271, 1.0
    %v301 = vadd.f32 %v273, 1.0
    %v302 = vadd.f32 %v275, 1.0
    %v303 = vadd.f32 %v277, 1.0
    %v304 = vadd.f32 %v279, 1.0
    %v305 = vadd.f32 %v281, 1.0
    %v306 = vadd.f32 %v283, 1.0
    %v307 = vadd.f32 %v285, 1.0
    %v308 = vadd.f32 %v287, 1.0
    %v309 = vadd.f32 %v289, 1.0
    %v310 = vadd.f32 %v291, 1.0
    %v311 = vadd.f32 %v293, 1.0
    %v312 = vadd.f32 %v295, 1.0
    %v313 = vadd.f32 %v297, 1.0
    %v314 = vrcp.pop %v298
    %v315 = vrcp.pop %v299
    %v316 = vrcp.pop %v300
    %v317 = vrcp.pop %v301
    %v318 = vrcp.pop %v302
    %v319 = vrcp.pop %v303
    %v320 = vrcp.pop %v304
    %v321 = vrcp.pop %v305
    %v322 = vrcp.pop %v306
    %v323 = vrcp.pop %v307
    %v324 = vrcp.pop %v308
    %v325 = vrcp.pop %v309
    %v326 = vrcp.pop %v310
    %v327 = vrcp.pop %v311
    %v328 = vrcp.pop %v312
    %v329 = vrcp.pop %v313
    %s330 = scalar_lea.vmem [#allocation2], 128
    %v331 = vld [vmem:[%s330] sm:$0xff]
    %v332 = vld [vmem:[%s330 + $0x8] sm:$0xff]
    %v333 = vld [vmem:[%s330 + $0x10] sm:$0xff]
    %v334 = vld [vmem:[%s330 + $0x18] sm:$0xff]
    %v335 = vld [vmem:[%s330 + $0x20] sm:$0xff]
    %v336 = vld [vmem:[%s330 + $0x28] sm:$0xff]
    %v337 = vld [vmem:[%s330 + $0x30] sm:$0xff]
    %v338 = vld [vmem:[%s330 + $0x38] sm:$0xff]
    %v339 = vld [vmem:[%s330 + $0x40] sm:$0xff]
    %v340 = vld [vmem:[%s330 + $0x48] sm:$0xff]
    %v341 = vld [vmem:[%s330 + $0x50] sm:$0xff]
    %v342 = vld [vmem:[%s330 + $0x58] sm:$0xff]
    %v343 = vld [vmem:[%s330 + $0x60] sm:$0xff]
    %v344 = vld [vmem:[%s330 + $0x68] sm:$0xff]
    %v345 = vld [vmem:[%s330 + $0x70] sm:$0xff]
    %v346 = vld [vmem:[%s330 + $0x78] sm:$0xff]
    %s347 = scalar_lea.vmem %s2, 1
    %v348 = vld [vmem:[%s347] sm:$0x1]
    %v350 = vlaneseq
    %v351 = vshrl.u32 %v350, 7
    %v352 = vsub.s32 0, %v351
    %v353 = vrot.slane %v348, %v352
    %355 = vmatprep.subr.mxu0 0.0
    %356 = vmatpush1.msra.mxu0 %v331
    %357 = vmatprep.subr.mxu0 0.0
    %358 = vmatpush1.msra.mxu0 %v332
    %359 = vmatprep.subr.mxu0 0.0
    %360 = vmatpush1.msra.mxu0 %v333
    %361 = vmatprep.subr.mxu0 0.0
    %362 = vmatpush1.msra.mxu0 %v334
    %363 = vmatprep.subr.mxu0 0.0
    %364 = vmatpush1.msra.mxu0 %v335
    %365 = vmatprep.subr.mxu0 0.0
    %366 = vmatpush1.msra.mxu0 %v336
    %367 = vmatprep.subr.mxu0 0.0
    %368 = vmatpush1.msra.mxu0 %v337
    %369 = vmatprep.subr.mxu0 0.0
    %370 = vmatpush1.msra.mxu0 %v338
    %371 = vmatprep.subr.mxu0 0.0
    %372 = vmatpush1.msra.mxu0 %v339
    %373 = vmatprep.subr.mxu0 0.0
    %374 = vmatpush1.msra.mxu0 %v340
    %375 = vmatprep.subr.mxu0 0.0
    %376 = vmatpush1.msra.mxu0 %v341
    %377 = vmatprep.subr.mxu0 0.0
    %378 = vmatpush1.msra.mxu0 %v342
    %379 = vmatprep.subr.mxu0 0.0
    %380 = vmatpush1.msra.mxu0 %v343
    %381 = vmatprep.subr.mxu0 0.0
    %382 = vmatpush1.msra.mxu0 %v344
    %383 = vmatprep.subr.mxu0 0.0
    %384 = vmatpush1.msra.mxu0 %v345
    %385 = vmatprep.subr.mxu0 0.0
    %386 = vmatpush1.msra.mxu0 %v346
    %387 = vmatprep.subr.mxu0 0.0
    %388 = vmatpush1.msra.mxu0 0.0
    %389 = vmatprep.subr.mxu0 0.0
    %390 = vmatpush1.msra.mxu0 0.0
    %391 = vmatprep.subr.mxu0 0.0
    %392 = vmatpush1.msra.mxu0 0.0
    %393 = vmatprep.subr.mxu0 0.0
    %394 = vmatpush1.msra.mxu0 0.0
    %395 = vmatprep.subr.mxu0 0.0
    %396 = vmatpush1.msra.mxu0 0.0
    %397 = vmatprep.subr.mxu0 0.0
    %398 = vmatpush1.msra.mxu0 0.0
    %399 = vmatprep.subr.mxu0 0.0
    %400 = vmatpush1.msra.mxu0 0.0
    %401 = vmatprep.subr.mxu0 0.0
    %402 = vmatpush1.msra.mxu0 0.0
    %403 = vmatprep.subr.mxu0 0.0
    %404 = vmatpush1.msra.mxu0 0.0
    %405 = vmatprep.subr.mxu0 0.0
    %406 = vmatpush1.msra.mxu0 0.0
    %407 = vmatprep.subr.mxu0 0.0
    %408 = vmatpush1.msra.mxu0 0.0
    %409 = vmatprep.subr.mxu0 0.0
    %410 = vmatpush1.msra.mxu0 0.0
    %411 = vmatprep.subr.mxu0 0.0
    %412 = vmatpush1.msra.mxu0 0.0
    %413 = vmatprep.subr.mxu0 0.0
    %414 = vmatpush1.msra.mxu0 0.0
    %415 = vmatprep.subr.mxu0 0.0
    %416 = vmatpush1.msra.mxu0 0.0
    %417 = vmatprep.subr.mxu0 0.0
    %418 = vmatpush1.msra.mxu0 0.0
    %419 = vmatprep.mubr.f32.mxu0 0.0
    %420 = vmatmul.mubr.f32.gmra.mrb[0].mxu0 %v314
    %v421 = vpop.f32.mrb[0].mxu0
    %v422 = vadd.f32 %v353, %v421
    %v423 = vpop.f32.mrb[0].mxu0
    %424 = vmatprep.mubr.f32.mxu0 0.0
    %425 = vmatmul.mubr.f32.gmra.mrb[0].mxu0 %v315
    %v426 = vpop.f32.mrb[0].mxu0
    %v427 = vadd.f32 %v353, %v426
    %v428 = vpop.f32.mrb[0].mxu0
    %429 = vmatprep.mubr.f32.mxu0 0.0
    %430 = vmatmul.mubr.f32.gmra.mrb[0].mxu0 %v316
    %v431 = vpop.f32.mrb[0].mxu0
    %v432 = vadd.f32 %v353, %v431
    %v433 = vpop.f32.mrb[0].mxu0
    %434 = vmatprep.mubr.f32.mxu0 0.0
    %435 = vmatmul.mubr.f32.gmra.mrb[0].mxu0 %v317
    %v436 = vpop.f32.mrb[0].mxu0
    %v437 = vadd.f32 %v353, %v436
    %v438 = vpop.f32.mrb[0].mxu0
    %439 = vmatprep.mubr.f32.mxu0 0.0
    %440 = vmatmul.mubr.f32.gmra.mrb[0].mxu0 %v318
    %v441 = vpop.f32.mrb[0].mxu0
    %v442 = vadd.f32 %v353, %v441
    %v443 = vpop.f32.mrb[0].mxu0
    %444 = vmatprep.mubr.f32.mxu0 0.0
    %445 = vmatmul.mubr.f32.gmra.mrb[0].mxu0 %v319
    %v446 = vpop.f32.mrb[0].mxu0
    %v447 = vadd.f32 %v353, %v446
    %v448 = vpop.f32.mrb[0].mxu0
    %449 = vmatprep.mubr.f32.mxu0 0.0
    %450 = vmatmul.mubr.f32.gmra.mrb[0].mxu0 %v320
    %v451 = vpop.f32.mrb[0].mxu0
    %v452 = vadd.f32 %v353, %v451
    %v453 = vpop.f32.mrb[0].mxu0
    %454 = vmatprep.mubr.f32.mxu0 0.0
    %455 = vmatmul.mubr.f32.gmra.mrb[0].mxu0 %v321
    %v456 = vpop.f32.mrb[0].mxu0
    %v457 = vadd.f32 %v353, %v456
    %v458 = vpop.f32.mrb[0].mxu0
    %459 = vmatprep.mubr.f32.mxu0 0.0
    %460 = vmatmul.mubr.f32.gmra.mrb[0].mxu0 %v322
    %v461 = vpop.f32.mrb[0].mxu0
    %v462 = vadd.f32 %v353, %v461
    %v463 = vpop.f32.mrb[0].mxu0
    %464 = vmatprep.mubr.f32.mxu0 0.0
    %465 = vmatmul.mubr.f32.gmra.mrb[0].mxu0 %v323
    %v466 = vpop.f32.mrb[0].mxu0
    %v467 = vadd.f32 %v353, %v466
    %v468 = vpop.f32.mrb[0].mxu0
    %469 = vmatprep.mubr.f32.mxu0 0.0
    %470 = vmatmul.mubr.f32.gmra.mrb[0].mxu0 %v324
    %v471 = vpop.f32.mrb[0].mxu0
    %v472 = vadd.f32 %v353, %v471
    %v473 = vpop.f32.mrb[0].mxu0
    %474 = vmatprep.mubr.f32.mxu0 0.0
    %475 = vmatmul.mubr.f32.gmra.mrb[0].mxu0 %v325
    %v476 = vpop.f32.mrb[0].mxu0
    %v477 = vadd.f32 %v353, %v476
    %v478 = vpop.f32.mrb[0].mxu0
    %479 = vmatprep.mubr.f32.mxu0 0.0
    %480 = vmatmul.mubr.f32.gmra.mrb[0].mxu0 %v326
    %v481 = vpop.f32.mrb[0].mxu0
    %v482 = vadd.f32 %v353, %v481
    %v483 = vpop.f32.mrb[0].mxu0
    %484 = vmatprep.mubr.f32.mxu0 0.0
    %485 = vmatmul.mubr.f32.gmra.mrb[0].mxu0 %v327
    %v486 = vpop.f32.mrb[0].mxu0
    %v487 = vadd.f32 %v353, %v486
    %v488 = vpop.f32.mrb[0].mxu0
    %489 = vmatprep.mubr.f32.mxu0 0.0
    %490 = vmatmul.mubr.f32.gmra.mrb[0].mxu0 %v328
    %v491 = vpop.f32.mrb[0].mxu0
    %v492 = vadd.f32 %v353, %v491
    %v493 = vpop.f32.mrb[0].mxu0
    %494 = vmatprep.mubr.f32.mxu0 0.0
    %495 = vmatmul.mubr.f32.gmra.mrb[0].mxu0 %v329
    %v496 = vpop.f32.mrb[0].mxu0
    %v497 = vadd.f32 %v353, %v496
    %v498 = vpop.f32.mrb[0].mxu0
    %499 = vdwg.mxu0
    %v500 = vsub.f32 0.0, %v422
    %v501 = vsub.f32 0.0, %v427
    %v502 = vsub.f32 0.0, %v432
    %v503 = vsub.f32 0.0, %v437
    %v504 = vsub.f32 0.0, %v442
    %v505 = vsub.f32 0.0, %v447
    %v506 = vsub.f32 0.0, %v452
    %v507 = vsub.f32 0.0, %v457
    %v508 = vsub.f32 0.0, %v462
    %v509 = vsub.f32 0.0, %v467
    %v510 = vsub.f32 0.0, %v472
    %v511 = vsub.f32 0.0, %v477
    %v512 = vsub.f32 0.0, %v482
    %v513 = vsub.f32 0.0, %v487
    %v514 = vsub.f32 0.0, %v492
    %v515 = vsub.f32 0.0, %v497
    %v516 = vmul.f32 %v500, 1.442695
    %v517 = vpow.pop %v516
    %v518 = vmul.f32 %v501, 1.442695
    %v519 = vpow.pop %v518
    %v520 = vmul.f32 %v502, 1.442695
    %v521 = vpow.pop %v520
    %v522 = vmul.f32 %v503, 1.442695
    %v523 = vpow.pop %v522
    %v524 = vmul.f32 %v504, 1.442695
    %v525 = vpow.pop %v524
    %v526 = vmul.f32 %v505, 1.442695
    %v527 = vpow.pop %v526
    %v528 = vmul.f32 %v506, 1.442695
    %v529 = vpow.pop %v528
    %v530 = vmul.f32 %v507, 1.442695
    %v531 = vpow.pop %v530
    %v532 = vmul.f32 %v508, 1.442695
    %v533 = vpow.pop %v532
    %v534 = vmul.f32 %v509, 1.442695
    %v535 = vpow.pop %v534
    %v536 = vmul.f32 %v510, 1.442695
    %v537 = vpow.pop %v536
    %v538 = vmul.f32 %v511, 1.442695
    %v539 = vpow.pop %v538
    %v540 = vmul.f32 %v512, 1.442695
    %v541 = vpow.pop %v540
    %v542 = vmul.f32 %v513, 1.442695
    %v543 = vpow.pop %v542
    %v544 = vmul.f32 %v514, 1.442695
    %v545 = vpow.pop %v544
    %v546 = vmul.f32 %v515, 1.442695
    %v547 = vpow.pop %v546
    %v548 = vadd.f32 %v517, 1.0
    %v549 = vadd.f32 %v519, 1.0
    %v550 = vadd.f32 %v521, 1.0
    %v551 = vadd.f32 %v523, 1.0
    %v552 = vadd.f32 %v525, 1.0
    %v553 = vadd.f32 %v527, 1.0
    %v554 = vadd.f32 %v529, 1.0
    %v555 = vadd.f32 %v531, 1.0
    %v556 = vadd.f32 %v533, 1.0
    %v557 = vadd.f32 %v535, 1.0
    %v558 = vadd.f32 %v537, 1.0
    %v559 = vadd.f32 %v539, 1.0
    %v560 = vadd.f32 %v541, 1.0
    %v561 = vadd.f32 %v543, 1.0
    %v562 = vadd.f32 %v545, 1.0
    %v563 = vadd.f32 %v547, 1.0
    %v564 = vrcp.pop %v548
    %v565 = vrcp.pop %v549
    %v566 = vrcp.pop %v550
    %v567 = vrcp.pop %v551
    %v568 = vrcp.pop %v552
    %v569 = vrcp.pop %v553
    %v570 = vrcp.pop %v554
    %v571 = vrcp.pop %v555
    %v572 = vrcp.pop %v556
    %v573 = vrcp.pop %v557
    %v574 = vrcp.pop %v558
    %v575 = vrcp.pop %v559
    %v576 = vrcp.pop %v560
    %v577 = vrcp.pop %v561
    %v578 = vrcp.pop %v562
    %v579 = vrcp.pop %v563
    %s580 = scalar_lea.vmem [#allocation2], 256
    %v581 = vld [vmem:[%s580] sm:$0xff]
    %v582 = vld [vmem:[%s580 + $0x8] sm:$0xff]
    %v583 = vld [vmem:[%s580 + $0x10] sm:$0xff]
    %v584 = vld [vmem:[%s580 + $0x18] sm:$0xff]
    %v585 = vld [vmem:[%s580 + $0x20] sm:$0xff]
    %v586 = vld [vmem:[%s580 + $0x28] sm:$0xff]
    %v587 = vld [vmem:[%s580 + $0x30] sm:$0xff]
    %v588 = vld [vmem:[%s580 + $0x38] sm:$0xff]
    %v589 = vld [vmem:[%s580 + $0x40] sm:$0xff]
    %v590 = vld [vmem:[%s580 + $0x48] sm:$0xff]
    %v591 = vld [vmem:[%s580 + $0x50] sm:$0xff]
    %v592 = vld [vmem:[%s580 + $0x58] sm:$0xff]
    %v593 = vld [vmem:[%s580 + $0x60] sm:$0xff]
    %v594 = vld [vmem:[%s580 + $0x68] sm:$0xff]
    %v595 = vld [vmem:[%s580 + $0x70] sm:$0xff]
    %v596 = vld [vmem:[%s580 + $0x78] sm:$0xff]
    %s597 = scalar_lea.vmem %s2, 2
    %v598 = vld [vmem:[%s597] sm:$0x1]
    %v600 = vlaneseq
    %v601 = vshrl.u32 %v600, 7
    %v602 = vsub.s32 0, %v601
    %v603 = vrot.slane %v598, %v602
    %605 = vmatprep.subr.mxu0 0.0
    %606 = vmatpush1.msra.mxu0 %v581
    %607 = vmatprep.subr.mxu0 0.0
    %608 = vmatpush1.msra.mxu0 %v582
    %609 = vmatprep.subr.mxu0 0.0
    %610 = vmatpush1.msra.mxu0 %v583
    %611 = vmatprep.subr.mxu0 0.0
    %612 = vmatpush1.msra.mxu0 %v584
    %613 = vmatprep.subr.mxu0 0.0
    %614 = vmatpush1.msra.mxu0 %v585
    %615 = vmatprep.subr.mxu0 0.0
    %616 = vmatpush1.msra.mxu0 %v586
    %617 = vmatprep.subr.mxu0 0.0
    %618 = vmatpush1.msra.mxu0 %v587
    %619 = vmatprep.subr.mxu0 0.0
    %620 = vmatpush1.msra.mxu0 %v588
    %621 = vmatprep.subr.mxu0 0.0
    %622 = vmatpush1.msra.mxu0 %v589
    %623 = vmatprep.subr.mxu0 0.0
    %624 = vmatpush1.msra.mxu0 %v590
    %625 = vmatprep.subr.mxu0 0.0
    %626 = vmatpush1.msra.mxu0 %v591
    %627 = vmatprep.subr.mxu0 0.0
    %628 = vmatpush1.msra.mxu0 %v592
    %629 = vmatprep.subr.mxu0 0.0
    %630 = vmatpush1.msra.mxu0 %v593
    %631 = vmatprep.subr.mxu0 0.0
    %632 = vmatpush1.msra.mxu0 %v594
    %633 = vmatprep.subr.mxu0 0.0
    %634 = vmatpush1.msra.mxu0 %v595
    %635 = vmatprep.subr.mxu0 0.0
    %636 = vmatpush1.msra.mxu0 %v596
    %637 = vmatprep.subr.mxu0 0.0
    %638 = vmatpush1.msra.mxu0 0.0
    %639 = vmatprep.subr.mxu0 0.0
    %640 = vmatpush1.msra.mxu0 0.0
    %641 = vmatprep.subr.mxu0 0.0
    %642 = vmatpush1.msra.mxu0 0.0
    %643 = vmatprep.subr.mxu0 0.0
    %644 = vmatpush1.msra.mxu0 0.0
    %645 = vmatprep.subr.mxu0 0.0
    %646 = vmatpush1.msra.mxu0 0.0
    %647 = vmatprep.subr.mxu0 0.0
    %648 = vmatpush1.msra.mxu0 0.0
    %649 = vmatprep.subr.mxu0 0.0
    %650 = vmatpush1.msra.mxu0 0.0
    %651 = vmatprep.subr.mxu0 0.0
    %652 = vmatpush1.msra.mxu0 0.0
    %653 = vmatprep.subr.mxu0 0.0
    %654 = vmatpush1.msra.mxu0 0.0
    %655 = vmatprep.subr.mxu0 0.0
    %656 = vmatpush1.msra.mxu0 0.0
    %657 = vmatprep.subr.mxu0 0.0
    %658 = vmatpush1.msra.mxu0 0.0
    %659 = vmatprep.subr.mxu0 0.0
    %660 = vmatpush1.msra.mxu0 0.0
    %661 = vmatprep.subr.mxu0 0.0
    %662 = vmatpush1.msra.mxu0 0.0
    %663 = vmatprep.subr.mxu0 0.0
    %664 = vmatpush1.msra.mxu0 0.0
    %665 = vmatprep.subr.mxu0 0.0
    %666 = vmatpush1.msra.mxu0 0.0
    %667 = vmatprep.subr.mxu0 0.0
    %668 = vmatpush1.msra.mxu0 0.0
    %669 = vmatprep.mubr.f32.mxu0 0.0
    %670 = vmatmul.mubr.f32.gmra.mrb[0].mxu0 %v564
    %v671 = vpop.f32.mrb[0].mxu0
    %v672 = vadd.f32 %v603, %v671
    %v673 = vpop.f32.mrb[0].mxu0
    %674 = vmatprep.mubr.f32.mxu0 0.0
    %675 = vmatmul.mubr.f32.gmra.mrb[0].mxu0 %v565
    %v676 = vpop.f32.mrb[0].mxu0
    %v677 = vadd.f32 %v603, %v676
    %v678 = vpop.f32.mrb[0].mxu0
    %679 = vmatprep.mubr.f32.mxu0 0.0
    %680 = vmatmul.mubr.f32.gmra.mrb[0].mxu0 %v566
    %v681 = vpop.f32.mrb[0].mxu0
    %v682 = vadd.f32 %v603, %v681
    %v683 = vpop.f32.mrb[0].mxu0
    %684 = vmatprep.mubr.f32.mxu0 0.0
    %685 = vmatmul.mubr.f32.gmra.mrb[0].mxu0 %v567
    %v686 = vpop.f32.mrb[0].mxu0
    %v687 = vadd.f32 %v603, %v686
    %v688 = vpop.f32.mrb[0].mxu0
    %689 = vmatprep.mubr.f32.mxu0 0.0
    %690 = vmatmul.mubr.f32.gmra.mrb[0].mxu0 %v568
    %v691 = vpop.f32.mrb[0].mxu0
    %v692 = vadd.f32 %v603, %v691
    %v693 = vpop.f32.mrb[0].mxu0
    %694 = vmatprep.mubr.f32.mxu0 0.0
    %695 = vmatmul.mubr.f32.gmra.mrb[0].mxu0 %v569
    %v696 = vpop.f32.mrb[0].mxu0
    %v697 = vadd.f32 %v603, %v696
    %v698 = vpop.f32.mrb[0].mxu0
    %699 = vmatprep.mubr.f32.mxu0 0.0
    %700 = vmatmul.mubr.f32.gmra.mrb[0].mxu0 %v570
    %v701 = vpop.f32.mrb[0].mxu0
    %v702 = vadd.f32 %v603, %v701
    %v703 = vpop.f32.mrb[0].mxu0
    %704 = vmatprep.mubr.f32.mxu0 0.0
    %705 = vmatmul.mubr.f32.gmra.mrb[0].mxu0 %v571
    %v706 = vpop.f32.mrb[0].mxu0
    %v707 = vadd.f32 %v603, %v706
    %v708 = vpop.f32.mrb[0].mxu0
    %709 = vmatprep.mubr.f32.mxu0 0.0
    %710 = vmatmul.mubr.f32.gmra.mrb[0].mxu0 %v572
    %v711 = vpop.f32.mrb[0].mxu0
    %v712 = vadd.f32 %v603, %v711
    %v713 = vpop.f32.mrb[0].mxu0
    %714 = vmatprep.mubr.f32.mxu0 0.0
    %715 = vmatmul.mubr.f32.gmra.mrb[0].mxu0 %v573
    %v716 = vpop.f32.mrb[0].mxu0
    %v717 = vadd.f32 %v603, %v716
    %v718 = vpop.f32.mrb[0].mxu0
    %719 = vmatprep.mubr.f32.mxu0 0.0
    %720 = vmatmul.mubr.f32.gmra.mrb[0].mxu0 %v574
    %v721 = vpop.f32.mrb[0].mxu0
    %v722 = vadd.f32 %v603, %v721
    %v723 = vpop.f32.mrb[0].mxu0
    %724 = vmatprep.mubr.f32.mxu0 0.0
    %725 = vmatmul.mubr.f32.gmra.mrb[0].mxu0 %v575
    %v726 = vpop.f32.mrb[0].mxu0
    %v727 = vadd.f32 %v603, %v726
    %v728 = vpop.f32.mrb[0].mxu0
    %729 = vmatprep.mubr.f32.mxu0 0.0
    %730 = vmatmul.mubr.f32.gmra.mrb[0].mxu0 %v576
    %v731 = vpop.f32.mrb[0].mxu0
    %v732 = vadd.f32 %v603, %v731
    %v733 = vpop.f32.mrb[0].mxu0
    %734 = vmatprep.mubr.f32.mxu0 0.0
    %735 = vmatmul.mubr.f32.gmra.mrb[0].mxu0 %v577
    %v736 = vpop.f32.mrb[0].mxu0
    %v737 = vadd.f32 %v603, %v736
    %v738 = vpop.f32.mrb[0].mxu0
    %739 = vmatprep.mubr.f32.mxu0 0.0
    %740 = vmatmul.mubr.f32.gmra.mrb[0].mxu0 %v578
    %v741 = vpop.f32.mrb[0].mxu0
    %v742 = vadd.f32 %v603, %v741
    %v743 = vpop.f32.mrb[0].mxu0
    %744 = vmatprep.mubr.f32.mxu0 0.0
    %745 = vmatmul.mubr.f32.gmra.mrb[0].mxu0 %v579
    %v746 = vpop.f32.mrb[0].mxu0
    %v747 = vadd.f32 %v603, %v746
    %v748 = vpop.f32.mrb[0].mxu0
    %749 = vdwg.mxu0
    %v750 = vsub.f32 0.0, %v672
    %v751 = vsub.f32 0.0, %v677
    %v752 = vsub.f32 0.0, %v682
    %v753 = vsub.f32 0.0, %v687
    %v754 = vsub.f32 0.0, %v692
    %v755 = vsub.f32 0.0, %v697
    %v756 = vsub.f32 0.0, %v702
    %v757 = vsub.f32 0.0, %v707
    %v758 = vsub.f32 0.0, %v712
    %v759 = vsub.f32 0.0, %v717
    %v760 = vsub.f32 0.0, %v722
    %v761 = vsub.f32 0.0, %v727
    %v762 = vsub.f32 0.0, %v732
    %v763 = vsub.f32 0.0, %v737
    %v764 = vsub.f32 0.0, %v742
    %v765 = vsub.f32 0.0, %v747
    %v766 = vmul.f32 %v750, 1.442695
    %v767 = vpow.pop %v766
    %v768 = vmul.f32 %v751, 1.442695
    %v769 = vpow.pop %v768
    %v770 = vmul.f32 %v752, 1.442695
    %v771 = vpow.pop %v770
    %v772 = vmul.f32 %v753, 1.442695
    %v773 = vpow.pop %v772
    %v774 = vmul.f32 %v754, 1.442695
    %v775 = vpow.pop %v774
    %v776 = vmul.f32 %v755, 1.442695
    %v777 = vpow.pop %v776
    %v778 = vmul.f32 %v756, 1.442695
    %v779 = vpow.pop %v778
    %v780 = vmul.f32 %v757, 1.442695
    %v781 = vpow.pop %v780
    %v782 = vmul.f32 %v758, 1.442695
    %v783 = vpow.pop %v782
    %v784 = vmul.f32 %v759, 1.442695
    %v785 = vpow.pop %v784
    %v786 = vmul.f32 %v760, 1.442695
    %v787 = vpow.pop %v786
    %v788 = vmul.f32 %v761, 1.442695
    %v789 = vpow.pop %v788
    %v790 = vmul.f32 %v762, 1.442695
    %v791 = vpow.pop %v790
    %v792 = vmul.f32 %v763, 1.442695
    %v793 = vpow.pop %v792
    %v794 = vmul.f32 %v764, 1.442695
    %v795 = vpow.pop %v794
    %v796 = vmul.f32 %v765, 1.442695
    %v797 = vpow.pop %v796
    %v798 = vadd.f32 %v767, 1.0
    %v799 = vadd.f32 %v769, 1.0
    %v800 = vadd.f32 %v771, 1.0
    %v801 = vadd.f32 %v773, 1.0
    %v802 = vadd.f32 %v775, 1.0
    %v803 = vadd.f32 %v777, 1.0
    %v804 = vadd.f32 %v779, 1.0
    %v805 = vadd.f32 %v781, 1.0
    %v806 = vadd.f32 %v783, 1.0
    %v807 = vadd.f32 %v785, 1.0
    %v808 = vadd.f32 %v787, 1.0
    %v809 = vadd.f32 %v789, 1.0
    %v810 = vadd.f32 %v791, 1.0
    %v811 = vadd.f32 %v793, 1.0
    %v812 = vadd.f32 %v795, 1.0
    %v813 = vadd.f32 %v797, 1.0
    %v814 = vrcp.pop %v798
    %v815 = vrcp.pop %v799
    %v816 = vrcp.pop %v800
    %v817 = vrcp.pop %v801
    %v818 = vrcp.pop %v802
    %v819 = vrcp.pop %v803
    %v820 = vrcp.pop %v804
    %v821 = vrcp.pop %v805
    %v822 = vrcp.pop %v806
    %v823 = vrcp.pop %v807
    %v824 = vrcp.pop %v808
    %v825 = vrcp.pop %v809
    %v826 = vrcp.pop %v810
    %v827 = vrcp.pop %v811
    %v828 = vrcp.pop %v812
    %v829 = vrcp.pop %v813
    %s830 = scalar_lea.vmem [#allocation2], 384
    %v831 = vld [vmem:[%s830] sm:$0xff]
    %v832 = vld [vmem:[%s830 + $0x8] sm:$0xff]
    %v833 = vld [vmem:[%s830 + $0x10] sm:$0xff]
    %v834 = vld [vmem:[%s830 + $0x18] sm:$0xff]
    %v835 = vld [vmem:[%s830 + $0x20] sm:$0xff]
    %v836 = vld [vmem:[%s830 + $0x28] sm:$0xff]
    %v837 = vld [vmem:[%s830 + $0x30] sm:$0xff]
    %v838 = vld [vmem:[%s830 + $0x38] sm:$0xff]
    %v839 = vld [vmem:[%s830 + $0x40] sm:$0xff]
    %v840 = vld [vmem:[%s830 + $0x48] sm:$0xff]
    %v841 = vld [vmem:[%s830 + $0x50] sm:$0xff]
    %v842 = vld [vmem:[%s830 + $0x58] sm:$0xff]
    %v843 = vld [vmem:[%s830 + $0x60] sm:$0xff]
    %v844 = vld [vmem:[%s830 + $0x68] sm:$0xff]
    %v845 = vld [vmem:[%s830 + $0x70] sm:$0xff]
    %v846 = vld [vmem:[%s830 + $0x78] sm:$0xff]
    %s847 = scalar_lea.vmem %s2, 3
    %v848 = vld [vmem:[%s847] sm:$0x1]
    %v850 = vlaneseq
    %v851 = vshrl.u32 %v850, 7
    %v852 = vsub.s32 0, %v851
    %v853 = vrot.slane %v848, %v852
    %855 = vmatprep.subr.mxu0 0.0
    %856 = vmatpush1.msra.mxu0 %v831
    %857 = vmatprep.subr.mxu0 0.0
    %858 = vmatpush1.msra.mxu0 %v832
    %859 = vmatprep.subr.mxu0 0.0
    %860 = vmatpush1.msra.mxu0 %v833
    %861 = vmatprep.subr.mxu0 0.0
    %862 = vmatpush1.msra.mxu0 %v834
    %863 = vmatprep.subr.mxu0 0.0
    %864 = vmatpush1.msra.mxu0 %v835
    %865 = vmatprep.subr.mxu0 0.0
    %866 = vmatpush1.msra.mxu0 %v836
    %867 = vmatprep.subr.mxu0 0.0
    %868 = vmatpush1.msra.mxu0 %v837
    %869 = vmatprep.subr.mxu0 0.0
    %870 = vmatpush1.msra.mxu0 %v838
    %871 = vmatprep.subr.mxu0 0.0
    %872 = vmatpush1.msra.mxu0 %v839
    %873 = vmatprep.subr.mxu0 0.0
    %874 = vmatpush1.msra.mxu0 %v840
    %875 = vmatprep.subr.mxu0 0.0
    %876 = vmatpush1.msra.mxu0 %v841
    %877 = vmatprep.subr.mxu0 0.0
    %878 = vmatpush1.msra.mxu0 %v842
    %879 = vmatprep.subr.mxu0 0.0
    %880 = vmatpush1.msra.mxu0 %v843
    %881 = vmatprep.subr.mxu0 0.0
    %882 = vmatpush1.msra.mxu0 %v844
    %883 = vmatprep.subr.mxu0 0.0
    %884 = vmatpush1.msra.mxu0 %v845
    %885 = vmatprep.subr.mxu0 0.0
    %886 = vmatpush1.msra.mxu0 %v846
    %887 = vmatprep.subr.mxu0 0.0
    %888 = vmatpush1.msra.mxu0 0.0
    %889 = vmatprep.subr.mxu0 0.0
    %890 = vmatpush1.msra.mxu0 0.0
    %891 = vmatprep.subr.mxu0 0.0
    %892 = vmatpush1.msra.mxu0 0.0
    %893 = vmatprep.subr.mxu0 0.0
    %894 = vmatpush1.msra.mxu0 0.0
    %895 = vmatprep.subr.mxu0 0.0
    %896 = vmatpush1.msra.mxu0 0.0
    %897 = vmatprep.subr.mxu0 0.0
    %898 = vmatpush1.msra.mxu0 0.0
    %899 = vmatprep.subr.mxu0 0.0
    %900 = vmatpush1.msra.mxu0 0.0
    %901 = vmatprep.subr.mxu0 0.0
    %902 = vmatpush1.msra.mxu0 0.0
    %903 = vmatprep.subr.mxu0 0.0
    %904 = vmatpush1.msra.mxu0 0.0
    %905 = vmatprep.subr.mxu0 0.0
    %906 = vmatpush1.msra.mxu0 0.0
    %907 = vmatprep.subr.mxu0 0.0
    %908 = vmatpush1.msra.mxu0 0.0
    %909 = vmatprep.subr.mxu0 0.0
    %910 = vmatpush1.msra.mxu0 0.0
    %911 = vmatprep.subr.mxu0 0.0
    %912 = vmatpush1.msra.mxu0 0.0
    %913 = vmatprep.subr.mxu0 0.0
    %914 = vmatpush1.msra.mxu0 0.0
    %915 = vmatprep.subr.mxu0 0.0
    %916 = vmatpush1.msra.mxu0 0.0
    %917 = vmatprep.subr.mxu0 0.0
    %918 = vmatpush1.msra.mxu0 0.0
    %919 = vmatprep.mubr.f32.mxu0 0.0
    %920 = vmatmul.mubr.f32.gmra.mrb[0].mxu0 %v814
    %v921 = vpop.f32.mrb[0].mxu0
    %v922 = vadd.f32 %v853, %v921
    %v923 = vpop.f32.mrb[0].mxu0
    %924 = vmatprep.mubr.f32.mxu0 0.0
    %925 = vmatmul.mubr.f32.gmra.mrb[0].mxu0 %v815
    %v926 = vpop.f32.mrb[0].mxu0
    %v927 = vadd.f32 %v853, %v926
    %v928 = vpop.f32.mrb[0].mxu0
    %929 = vmatprep.mubr.f32.mxu0 0.0
    %930 = vmatmul.mubr.f32.gmra.mrb[0].mxu0 %v816
    %v931 = vpop.f32.mrb[0].mxu0
    %v932 = vadd.f32 %v853, %v931
    %v933 = vpop.f32.mrb[0].mxu0
    %934 = vmatprep.mubr.f32.mxu0 0.0
    %935 = vmatmul.mubr.f32.gmra.mrb[0].mxu0 %v817
    %v936 = vpop.f32.mrb[0].mxu0
    %v937 = vadd.f32 %v853, %v936
    %v938 = vpop.f32.mrb[0].mxu0
    %939 = vmatprep.mubr.f32.mxu0 0.0
    %940 = vmatmul.mubr.f32.gmra.mrb[0].mxu0 %v818
    %v941 = vpop.f32.mrb[0].mxu0
    %v942 = vadd.f32 %v853, %v941
    %v943 = vpop.f32.mrb[0].mxu0
    %944 = vmatprep.mubr.f32.mxu0 0.0
    %945 = vmatmul.mubr.f32.gmra.mrb[0].mxu0 %v819
    %v946 = vpop.f32.mrb[0].mxu0
    %v947 = vadd.f32 %v853, %v946
    %v948 = vpop.f32.mrb[0].mxu0
    %949 = vmatprep.mubr.f32.mxu0 0.0
    %950 = vmatmul.mubr.f32.gmra.mrb[0].mxu0 %v820
    %v951 = vpop.f32.mrb[0].mxu0
    %v952 = vadd.f32 %v853, %v951
    %v953 = vpop.f32.mrb[0].mxu0
    %954 = vmatprep.mubr.f32.mxu0 0.0
    %955 = vmatmul.mubr.f32.gmra.mrb[0].mxu0 %v821
    %v956 = vpop.f32.mrb[0].mxu0
    %v957 = vadd.f32 %v853, %v956
    %v958 = vpop.f32.mrb[0].mxu0
    %959 = vmatprep.mubr.f32.mxu0 0.0
    %960 = vmatmul.mubr.f32.gmra.mrb[0].mxu0 %v822
    %v961 = vpop.f32.mrb[0].mxu0
    %v962 = vadd.f32 %v853, %v961
    %v963 = vpop.f32.mrb[0].mxu0
    %964 = vmatprep.mubr.f32.mxu0 0.0
    %965 = vmatmul.mubr.f32.gmra.mrb[0].mxu0 %v823
    %v966 = vpop.f32.mrb[0].mxu0
    %v967 = vadd.f32 %v853, %v966
    %v968 = vpop.f32.mrb[0].mxu0
    %969 = vmatprep.mubr.f32.mxu0 0.0
    %970 = vmatmul.mubr.f32.gmra.mrb[0].mxu0 %v824
    %v971 = vpop.f32.mrb[0].mxu0
    %v972 = vadd.f32 %v853, %v971
    %v973 = vpop.f32.mrb[0].mxu0
    %974 = vmatprep.mubr.f32.mxu0 0.0
    %975 = vmatmul.mubr.f32.gmra.mrb[0].mxu0 %v825
    %v976 = vpop.f32.mrb[0].mxu0
    %v977 = vadd.f32 %v853, %v976
    %v978 = vpop.f32.mrb[0].mxu0
    %979 = vmatprep.mubr.f32.mxu0 0.0
    %980 = vmatmul.mubr.f32.gmra.mrb[0].mxu0 %v826
    %v981 = vpop.f32.mrb[0].mxu0
    %v982 = vadd.f32 %v853, %v981
    %v983 = vpop.f32.mrb[0].mxu0
    %984 = vmatprep.mubr.f32.mxu0 0.0
    %985 = vmatmul.mubr.f32.gmra.mrb[0].mxu0 %v827
    %v986 = vpop.f32.mrb[0].mxu0
    %v987 = vadd.f32 %v853, %v986
    %v988 = vpop.f32.mrb[0].mxu0
    %989 = vmatprep.mubr.f32.mxu0 0.0
    %990 = vmatmul.mubr.f32.gmra.mrb[0].mxu0 %v828
    %v991 = vpop.f32.mrb[0].mxu0
    %v992 = vadd.f32 %v853, %v991
    %v993 = vpop.f32.mrb[0].mxu0
    %994 = vmatprep.mubr.f32.mxu0 0.0
    %995 = vmatmul.mubr.f32.gmra.mrb[0].mxu0 %v829
    %v996 = vpop.f32.mrb[0].mxu0
    %v997 = vadd.f32 %v853, %v996
    %v998 = vpop.f32.mrb[0].mxu0
    %999 = vdwg.mxu0
    %v1000 = vsub.f32 0.0, %v922
    %v1001 = vsub.f32 0.0, %v927
    %v1002 = vsub.f32 0.0, %v932
    %v1003 = vsub.f32 0.0, %v937
    %v1004 = vsub.f32 0.0, %v942
    %v1005 = vsub.f32 0.0, %v947
    %v1006 = vsub.f32 0.0, %v952
    %v1007 = vsub.f32 0.0, %v957
    %v1008 = vsub.f32 0.0, %v962
    %v1009 = vsub.f32 0.0, %v967
    %v1010 = vsub.f32 0.0, %v972
    %v1011 = vsub.f32 0.0, %v977
    %v1012 = vsub.f32 0.0, %v982
    %v1013 = vsub.f32 0.0, %v987
    %v1014 = vsub.f32 0.0, %v992
    %v1015 = vsub.f32 0.0, %v997
    %v1016 = vmul.f32 %v1000, 1.442695
    %v1017 = vpow.pop %v1016
    %v1018 = vmul.f32 %v1001, 1.442695
    %v1019 = vpow.pop %v1018
    %v1020 = vmul.f32 %v1002, 1.442695
    %v1021 = vpow.pop %v1020
    %v1022 = vmul.f32 %v1003, 1.442695
    %v1023 = vpow.pop %v1022
    %v1024 = vmul.f32 %v1004, 1.442695
    %v1025 = vpow.pop %v1024
    %v1026 = vmul.f32 %v1005, 1.442695
    %v1027 = vpow.pop %v1026
    %v1028 = vmul.f32 %v1006, 1.442695
    %v1029 = vpow.pop %v1028
    %v1030 = vmul.f32 %v1007, 1.442695
    %v1031 = vpow.pop %v1030
    %v1032 = vmul.f32 %v1008, 1.442695
    %v1033 = vpow.pop %v1032
    %v1034 = vmul.f32 %v1009, 1.442695
    %v1035 = vpow.pop %v1034
    %v1036 = vmul.f32 %v1010, 1.442695
    %v1037 = vpow.pop %v1036
    %v1038 = vmul.f32 %v1011, 1.442695
    %v1039 = vpow.pop %v1038
    %v1040 = vmul.f32 %v1012, 1.442695
    %v1041 = vpow.pop %v1040
    %v1042 = vmul.f32 %v1013, 1.442695
    %v1043 = vpow.pop %v1042
    %v1044 = vmul.f32 %v1014, 1.442695
    %v1045 = vpow.pop %v1044
    %v1046 = vmul.f32 %v1015, 1.442695
    %v1047 = vpow.pop %v1046
    %v1048 = vadd.f32 %v1017, 1.0
    %v1049 = vadd.f32 %v1019, 1.0
    %v1050 = vadd.f32 %v1021, 1.0
    %v1051 = vadd.f32 %v1023, 1.0
    %v1052 = vadd.f32 %v1025, 1.0
    %v1053 = vadd.f32 %v1027, 1.0
    %v1054 = vadd.f32 %v1029, 1.0
    %v1055 = vadd.f32 %v1031, 1.0
    %v1056 = vadd.f32 %v1033, 1.0
    %v1057 = vadd.f32 %v1035, 1.0
    %v1058 = vadd.f32 %v1037, 1.0
    %v1059 = vadd.f32 %v1039, 1.0
    %v1060 = vadd.f32 %v1041, 1.0
    %v1061 = vadd.f32 %v1043, 1.0
    %v1062 = vadd.f32 %v1045, 1.0
    %v1063 = vadd.f32 %v1047, 1.0
    %v1064 = vrcp.pop %v1048
    %v1065 = vrcp.pop %v1049
    %v1066 = vrcp.pop %v1050
    %v1067 = vrcp.pop %v1051
    %v1068 = vrcp.pop %v1052
    %v1069 = vrcp.pop %v1053
    %v1070 = vrcp.pop %v1054
    %v1071 = vrcp.pop %v1055
    %v1072 = vrcp.pop %v1056
    %v1073 = vrcp.pop %v1057
    %v1074 = vrcp.pop %v1058
    %v1075 = vrcp.pop %v1059
    %v1076 = vrcp.pop %v1060
    %v1077 = vrcp.pop %v1061
    %v1078 = vrcp.pop %v1062
    %v1079 = vrcp.pop %v1063
    %1080 = vxpose.xlu0.b32.start [1/16] %v1064, 128
    %1081 = vxpose.xlu0.b32.cont [2/16] %v1065, 128
    %1082 = vxpose.xlu0.b32.cont [3/16] %v1066, 128
    %1083 = vxpose.xlu0.b32.cont [4/16] %v1067, 128
    %1084 = vxpose.xlu0.b32.cont [5/16] %v1068, 128
    %1085 = vxpose.xlu0.b32.cont [6/16] %v1069, 128
    %1086 = vxpose.xlu0.b32.cont [7/16] %v1070, 128
    %1087 = vxpose.xlu0.b32.cont [8/16] %v1071, 128
    %1088 = vxpose.xlu0.b32.cont [9/16] %v1072, 128
    %1089 = vxpose.xlu0.b32.cont [10/16] %v1073, 128
    %1090 = vxpose.xlu0.b32.cont [11/16] %v1074, 128
    %1091 = vxpose.xlu0.b32.cont [12/16] %v1075, 128
    %1092 = vxpose.xlu0.b32.cont [13/16] %v1076, 128
    %1093 = vxpose.xlu0.b32.cont [14/16] %v1077, 128
    %1094 = vxpose.xlu0.b32.cont [15/16] %v1078, 128
    %1095 = vxpose.xlu0.b32.end [16/16] %v1079, 128
    %v1096 = vpop.trf.xlu0
    %v1097 = vpop.trf.xlu0
    %v1098 = vpop.trf.xlu0
    %v1099 = vpop.trf.xlu0
    %v1100 = vpop.trf.xlu0
    %v1101 = vpop.trf.xlu0
    %v1102 = vpop.trf.xlu0
    %v1103 = vpop.trf.xlu0
    %v1104 = vpop.trf.xlu0
    %v1105 = vpop.trf.xlu0
    %v1106 = vpop.trf.xlu0
    %v1107 = vpop.trf.xlu0
    %v1108 = vpop.trf.xlu0
    %v1109 = vpop.trf.xlu0
    %v1110 = vpop.trf.xlu0
    %v1111 = vpop.trf.xlu0
    %1112 = vst [vmem:[#allocation5] sm:$0xff] %v1096
    // Predicated region
    $region18: #{tpu_custom_call.1} parent=1 // pred_check
      _
    $region19: #{tpu_custom_call.1} parent=1 // pred_check_branch
      %1114 = sbr.rel (0) target = $region21
    $region20: #{tpu_custom_call.1} parent=1 // pred_region
      %s1116 = ssub.s32 128, 128
      %1117 = vsyncadd [#allocation4], %s1116
      %s1119 = sshll.u32 [#allocation5], 4
      %s1120 = int_to_ptr.vmem [resolvable:$true] %s1119
      %1122 = dma.vmem_to_hbm [thread:$0]  %s1120, 128, %s3, [#allocation4]
    $region21: #{tpu_custom_call.1} parent=1 // pred_fallthru
      _
    // Predicated region
    $region22: #{tpu_custom_call.1} parent=1 // pred_check
      _
    $region23: #{tpu_custom_call.1} parent=1 // pred_check_branch
      %1124 = sbr.rel (0) target = $region25
    $region24: #{tpu_custom_call.1} parent=1 // pred_region
      %1125 = dma.done [#allocation4], 128
    $region25: #{tpu_custom_call.1} parent=1 // pred_fallthru
      _
    %1126 = vsyncpa [#allocation3], 1
    %1127 = vsyncpa [#allocation4], 1

</llo_original>
